<compile_context>
chip_gen: v5e
topology: v5e:2x2
jax: 0.10.0
libtpu: 0.0.40
codegen_flags: <defaults>
</compile_context>

<pallas_src>
import functools

import numpy as np
import jax
import jax.numpy as jnp
from jax import lax
from jax.experimental import pallas as pl
from jax.experimental.pallas import tpu as pltpu

UP = 28       # torch.nn.Upsample(scale_factor=28)  (nearest)
POOL = 32     # torch.nn.AvgPool2d(kernel_size=32)  (stride = kernel_size)

PATCH = 7          # patch size applied to the resized image
WIDTH = 64         # encoder width
EMBED = 32         # joint embedding dim
VOCAB = 64         # synthetic text vocab
LOGIT_SCALE = float(np.exp(np.log(1.0 / 0.07)))   # CLIP's logit_scale init (unclamped)


# -----------------------------------------------------------------------------
# Exact fused Upsample(28, nearest) + AvgPool2d(32) as a separable matrix R.
#   R[o, i] = |{u in [32*o, 32*o + 32) : u // 28 == i}| / 32
# so  avg_pool(upsample(x)) == R_h @ x @ R_w^T   (per channel).
# -----------------------------------------------------------------------------
@functools.lru_cache(maxsize=None)
def _resize_matrix_np(n_in: int) -> np.ndarray:
    n_out = (n_in * UP) // POOL
    src = np.arange(n_in * UP) // UP
    r = np.zeros((n_out, n_in), dtype=np.float32)
    for o in range(n_out):
        for i in src[o * POOL:(o + 1) * POOL]:
            r[o, i] += 1.0 / POOL
    return r


# -----------------------------------------------------------------------------
# The one kernel: image projection (folded whole image path) + L2 normalize +
# scaled cosine logits + (1 - logits/100), all in one no-grid invocation.
#   img_flat: (B, C*H*W) bf16     w_img_full: (C*H*W, E) bf16
#   txt_pooled: (Bt, E) f32       out: (B, Bt) f32
# -----------------------------------------------------------------------------
def _clip_head_kernel(img_ref, wimg_ref, txt_ref, o_ref, *, logit_scale):
    # (B, C*H*W) @ (C*H*W, E) — contraction dim 768 (6 full lane groups), f32 acc.
    img = jnp.dot(img_ref[...], wimg_ref[...],
                  preferred_element_type=jnp.float32)                 # (B, E)
    txt = txt_ref[...].astype(jnp.float32)                            # (Bt, E)
    # L2 normalize (eps keeps rsqrt finite for degenerate near-zero features).
    img = img * lax.rsqrt(jnp.sum(img * img, axis=-1, keepdims=True) + 1e-12)
    txt = txt * lax.rsqrt(jnp.sum(txt * txt, axis=-1, keepdims=True) + 1e-12)
    logits = logit_scale * lax.dot_general(                           # (B, Bt)
        img, txt, (((1,), (1,)), ((), ())),
        preferred_element_type=jnp.float32)
    o_ref[...] = 1.0 - logits / 100.0


# -----------------------------------------------------------------------------
# Parameters (deterministic, synthetic) with all linear stages pre-folded.
# -----------------------------------------------------------------------------
def init_params(channels=3, h=16, w=16):
    k = jax.random.PRNGKey(0)
    k1, k2, k3, k4 = jax.random.split(k, 4)
    feat = channels * PATCH * PATCH
    w_patch    = jax.random.normal(k1, (feat, WIDTH), jnp.float32) * 0.02
    w_img_proj = jax.random.normal(k2, (WIDTH, EMBED), jnp.float32) * 0.02
    tok_embed  = jax.random.normal(k3, (VOCAB, WIDTH), jnp.float32) * 0.02
    w_txt_proj = jax.random.normal(k4, (WIDTH, EMBED), jnp.float32) * 0.02

    # ---- fold the whole (linear) image path into one (C*H*W, E) matrix ----
    ho, wo = (h * UP) // POOL, (w * UP) // POOL
    nph, npw = ho // PATCH, wo // PATCH
    rh = _resize_matrix_np(h)                                  # (Ho, H)
    rw = _resize_matrix_np(w)                                  # (Wo, W)
    # resize + mean-over-patches collapsed along each axis:
    #   gh[di, h] = (1/nph) * sum_ph rh[ph*P + di, h]
    gh = rh.reshape(nph, PATCH, h).mean(axis=0)                # (P, H)
    gw = rw.reshape(npw, PATCH, w).mean(axis=0)                # (P, W)
    # patch-embed @ image-projection, feature layout (c, di, dj) channel-major
    w_fold = np.asarray(jnp.dot(w_patch, w_img_proj)).reshape(
        channels, PATCH, PATCH, EMBED)                         # (C, P, P, E)
    # M[(c,h,w), e] = sum_{di,dj} gh[di,h] * gw[dj,w] * w_fold[c,di,dj,e]
    w_img_full = np.einsum('ih,jw,cije->chwe', gh, gw, w_fold).reshape(
        channels * h * w, EMBED)                               # (C*H*W, E)

    # ---- fold the text path: tok_embed @ w_txt_proj (mean commutes) ----
    tok_embed_eff = jnp.dot(tok_embed, w_txt_proj)             # (VOCAB, E)

    return {
        "w_img_full": jnp.asarray(w_img_full, jnp.bfloat16),   # MXU-native operand
        "tok_embed_eff": jnp.asarray(tok_embed_eff, jnp.float32),
    }


# -----------------------------------------------------------------------------
# Full forward (mirrors CLIPLoss.forward).
# -----------------------------------------------------------------------------
@jax.jit
def clip_loss_forward(image, text, params):
    b = image.shape[0]
    bt = text.shape[0]

    # Image path: resize/patchify/mean/projection are all folded into
    # params["w_img_full"]; just flatten the raw image.
    img_flat = image.reshape(b, -1).astype(jnp.bfloat16)        # (B, C*H*W)
    feat_dim = img_flat.shape[1]

    # Text path glue (XLA): token-embedding gather on pre-folded (VOCAB, E)
    # table + mean over sequence.  (Data-dependent gather stays outside Pallas.)
    txt_pooled = jnp.mean(
        jnp.take(params["tok_embed_eff"], text, axis=0), axis=1)  # (Bt, E) f32

    w_img_full = params["w_img_full"]                            # (C*H*W, E) bf16

    cost = pl.CostEstimate(
        flops=int(2 * (b * feat_dim * EMBED + b * bt * EMBED)),
        transcendentals=2,
        bytes_accessed=int(img_flat.size * 2 + w_img_full.size * 2
                           + txt_pooled.size * 4 + b * bt * 4),
    )

    # One fused Pallas call: project + normalize + scaled logits + 1 - /100.
    similarity = pl.pallas_call(
        functools.partial(_clip_head_kernel, logit_scale=LOGIT_SCALE),
        out_shape=jax.ShapeDtypeStruct((b, bt), jnp.float32),
        in_specs=[pl.BlockSpec(memory_space=pltpu.MemorySpace.VMEM)] * 3,
        out_specs=pl.BlockSpec(memory_space=pltpu.MemorySpace.VMEM),
        cost_estimate=cost,
    )(img_flat, w_img_full, txt_pooled)
    return similarity


if __name__ == "__main__":
    key = jax.random.PRNGKey(0)
    k_img, k_txt = jax.random.split(key)

    # image: (B, C, H, W) NCHW; H*28/32 = 14 -> 2x2 patches of size 7
    B, C, H, W = 2, 3, 16, 16
    image = jax.random.normal(k_img, (B, C, H, W), jnp.float32)
    # text: (B_text, seq) integer token ids
    text = jax.random.randint(k_txt, (2, 8), 0, VOCAB, jnp.int32)

    params = init_params(channels=C, h=H, w=W)
    sim = clip_loss_forward(image, text, params)
    sim = jax.block_until_ready(sim)

    assert sim.shape == (2, 2), sim.shape
    assert bool(jnp.all(jnp.isfinite(sim))), "non-finite output"
    print("KERNEL_OK")
</pallas_src>

<mosaic_0001>
module attributes {stable_mosaic.version = 11 : i64} {
  func.func @_clip_head_kernel(%arg0: memref<2x768xbf16, #tpu.memory_space<vmem>>, %arg1: memref<768x32xbf16, #tpu.memory_space<vmem>>, %arg2: memref<2x32xf32, #tpu.memory_space<vmem>>, %arg3: memref<2x2xf32, #tpu.memory_space<vmem>>) attributes {dimension_semantics = [], scalar_prefetch = 0 : i64, scratch_operands = 0 : i64, tpu.core_type = #tpu.core_type<tc>} {
    %c0 = arith.constant 0 : index
    %c0_0 = arith.constant 0 : index
    %0 = vector.load %arg0[%c0, %c0_0] : memref<2x768xbf16, #tpu.memory_space<vmem>>, vector<2x768xbf16>
    %c0_1 = arith.constant 0 : index
    %c0_2 = arith.constant 0 : index
    %1 = vector.load %arg1[%c0_1, %c0_2] : memref<768x32xbf16, #tpu.memory_space<vmem>>, vector<768x32xbf16>
    %cst = arith.constant dense<0.000000e+00> : vector<2x32xf32>
    %2 = tpu.matmul %0, %1, %cst {dimension_numbers = #tpu.dot_dimension_numbers<[1], [0], [0], [1], [0, 0, 1, 1], [], []>} : vector<2x768xbf16>, vector<768x32xbf16>, vector<2x32xf32> -> vector<2x32xf32>
    %c0_3 = arith.constant 0 : index
    %c0_4 = arith.constant 0 : index
    %3 = vector.load %arg2[%c0_3, %c0_4] : memref<2x32xf32, #tpu.memory_space<vmem>>, vector<2x32xf32>
    %4 = arith.mulf %2, %2 : vector<2x32xf32>
    %cst_5 = arith.constant dense<0.000000e+00> : vector<2xf32>
    %5 = vector.multi_reduction <add>, %4, %cst_5 [1] : vector<2x32xf32> to vector<2xf32>
    %6 = vector.shape_cast %5 : vector<2xf32> to vector<2x1xf32>
    %cst_6 = arith.constant 9.99999996E-13 : f32
    %7 = vector.broadcast %cst_6 : f32 to vector<2x1xf32>
    %8 = arith.addf %6, %7 : vector<2x1xf32>
    %9 = math.rsqrt %8 : vector<2x1xf32>
    %10 = vector.broadcast %9 : vector<2x1xf32> to vector<2x32xf32>
    %11 = arith.mulf %2, %10 : vector<2x32xf32>
    %12 = arith.mulf %3, %3 : vector<2x32xf32>
    %cst_7 = arith.constant dense<0.000000e+00> : vector<2xf32>
    %13 = vector.multi_reduction <add>, %12, %cst_7 [1] : vector<2x32xf32> to vector<2xf32>
    %14 = vector.shape_cast %13 : vector<2xf32> to vector<2x1xf32>
    %cst_8 = arith.constant 9.99999996E-13 : f32
    %15 = vector.broadcast %cst_8 : f32 to vector<2x1xf32>
    %16 = arith.addf %14, %15 : vector<2x1xf32>
    %17 = math.rsqrt %16 : vector<2x1xf32>
    %18 = vector.broadcast %17 : vector<2x1xf32> to vector<2x32xf32>
    %19 = arith.mulf %3, %18 : vector<2x32xf32>
    %cst_9 = arith.constant dense<0.000000e+00> : vector<2x2xf32>
    %20 = tpu.matmul %11, %19, %cst_9 {dimension_numbers = #tpu.dot_dimension_numbers<[1], [1], [0], [0], [0, 0, 1, 0], [], []>} : vector<2x32xf32>, vector<2x32xf32>, vector<2x2xf32> -> vector<2x2xf32>
    %cst_10 = arith.constant 14.2857141 : f32
    %21 = vector.broadcast %cst_10 : f32 to vector<2x2xf32>
    %22 = arith.mulf %21, %20 : vector<2x2xf32>
    %cst_11 = arith.constant 1.000000e+02 : f32
    %23 = vector.broadcast %cst_11 : f32 to vector<2x2xf32>
    %24 = arith.divf %22, %23 : vector<2x2xf32>
    %cst_12 = arith.constant 1.000000e+00 : f32
    %25 = vector.broadcast %cst_12 : f32 to vector<2x2xf32>
    %26 = arith.subf %25, %24 : vector<2x2xf32>
    %c0_13 = arith.constant 0 : index
    %c0_14 = arith.constant 0 : index
    %27 = vector.load %arg3[%c0_13, %c0_14] : memref<2x2xf32, #tpu.memory_space<vmem>>, vector<2x2xf32>
    tpu.vector_store %arg3[%c0_13, %c0_14], %26 {strides = array<i32>} : memref<2x2xf32, #tpu.memory_space<vmem>>, vector<2x2xf32>,
    return
  }
}

</mosaic_0001>

<llo_original>
// kernel: clip_loss_forward.1
$region0: #{clip_loss_forward.1}
  #allocation0 [shape = 'u32[]', space=smem, size = 0x4, offset = 0x4, fixed_abs, tag = 'smem constant byte address 0x4 - core index']
  #allocation1 [shape = 'u32[72,128]{1,0:T(1,128)}', space=vmem, size = 0x9000, scoped, tag = 'internal scratch']
  %s0 = inlined_call_operand.vmem [shape: bf16[2,768], index: 0, kind: input, shape index: {}]
  %s1 = inlined_call_operand.vmem [shape: bf16[768,32], index: 1, kind: input, shape index: {}]
  %s2 = inlined_call_operand.vmem [shape: f32[2,32], index: 2, kind: input, shape index: {}]
  %s3 = inlined_call_operand.hbm [shape: f32[2,2], index: 3, kind: output, shape index: {}]
  %s4 = sld [smem:[#allocation0]]
  $region22: #{clip_loss_forward.1} parent=0
    _
  %s6 = ssub.s32 1, %s4
  %s7 = scalar_select 0, %s6, %s4
  $region1: #{clip_loss_forward.1} parent=0
    #allocation2 [shape = 'u8[1024]{0}', space=vmem, size = 0x400, scoped, tag = 'output window, operand 0, single buffered']
    #allocation3 [shape = 's32[1]{0}', space=sflag, size = 0x4, scoped, tag = 'scoped memory for clip_loss_forward.1']
    %8 = vsyncpa [#allocation3], 0
    // Predicated region
    $region2: #{clip_loss_forward.1} parent=1 // pred_check
      _
    $region3: #{clip_loss_forward.1} parent=1 // pred_check_branch
      %10 = sbr.rel (0) target = $region5
    $region4: #{clip_loss_forward.1} parent=1 // pred_region
      _
    $region5: #{clip_loss_forward.1} parent=1 // pred_fallthru
      _
    // Predicated region
    $region6: #{clip_loss_forward.1} parent=1 // pred_check
      _
    $region7: #{clip_loss_forward.1} parent=1 // pred_check_branch
      %12 = sbr.rel (0) target = $region9
    $region8: #{clip_loss_forward.1} parent=1 // pred_region
      _
    $region9: #{clip_loss_forward.1} parent=1 // pred_fallthru
      _
    // Predicated region
    $region10: #{clip_loss_forward.1} parent=1 // pred_check
      _
    $region11: #{clip_loss_forward.1} parent=1 // pred_check_branch
      %14 = sbr.rel (0) target = $region13
    $region12: #{clip_loss_forward.1} parent=1 // pred_region
      _
    $region13: #{clip_loss_forward.1} parent=1 // pred_fallthru
      _
    %v15 = vld [vmem:[%s0] sm:$0x3f]
    %v16 = vld [vmem:[%s1] sm:$0xf]
    %v17 = vld [vmem:[%s1 + $0x4] sm:$0xf]
    %v18 = vld [vmem:[%s1 + $0x8] sm:$0xf]
    %v19 = vld [vmem:[%s1 + $0xc] sm:$0xf]
    %v20 = vld [vmem:[%s1 + $0x10] sm:$0xf]
    %v21 = vld [vmem:[%s1 + $0x14] sm:$0xf]
    %v22 = vld [vmem:[%s1 + $0x18] sm:$0xf]
    %v23 = vld [vmem:[%s1 + $0x1c] sm:$0xf]
    %v24 = vld [vmem:[%s1 + $0x20] sm:$0xf]
    %v25 = vld [vmem:[%s1 + $0x24] sm:$0xf]
    %v26 = vld [vmem:[%s1 + $0x28] sm:$0xf]
    %v27 = vld [vmem:[%s1 + $0x2c] sm:$0xf]
    %v28 = vld [vmem:[%s1 + $0x30] sm:$0xf]
    %v29 = vld [vmem:[%s1 + $0x34] sm:$0xf]
    %v30 = vld [vmem:[%s1 + $0x38] sm:$0xf]
    %v31 = vld [vmem:[%s1 + $0x3c] sm:$0xf]
    %v32 = vld [vmem:[%s1 + $0x40] sm:$0xf]
    %v33 = vld [vmem:[%s1 + $0x44] sm:$0xf]
    %v34 = vld [vmem:[%s1 + $0x48] sm:$0xf]
    %v35 = vld [vmem:[%s1 + $0x4c] sm:$0xf]
    %v36 = vld [vmem:[%s1 + $0x50] sm:$0xf]
    %v37 = vld [vmem:[%s1 + $0x54] sm:$0xf]
    %v38 = vld [vmem:[%s1 + $0x58] sm:$0xf]
    %v39 = vld [vmem:[%s1 + $0x5c] sm:$0xf]
    %v40 = vld [vmem:[%s1 + $0x60] sm:$0xf]
    %v41 = vld [vmem:[%s1 + $0x64] sm:$0xf]
    %v42 = vld [vmem:[%s1 + $0x68] sm:$0xf]
    %v43 = vld [vmem:[%s1 + $0x6c] sm:$0xf]
    %v44 = vld [vmem:[%s1 + $0x70] sm:$0xf]
    %v45 = vld [vmem:[%s1 + $0x74] sm:$0xf]
    %v46 = vld [vmem:[%s1 + $0x78] sm:$0xf]
    %v47 = vld [vmem:[%s1 + $0x7c] sm:$0xf]
    %v48 = vld [vmem:[%s1 + $0x80] sm:$0xf]
    %v49 = vld [vmem:[%s1 + $0x84] sm:$0xf]
    %v50 = vld [vmem:[%s1 + $0x88] sm:$0xf]
    %v51 = vld [vmem:[%s1 + $0x8c] sm:$0xf]
    %v52 = vld [vmem:[%s1 + $0x90] sm:$0xf]
    %v53 = vld [vmem:[%s1 + $0x94] sm:$0xf]
    %v54 = vld [vmem:[%s1 + $0x98] sm:$0xf]
    %v55 = vld [vmem:[%s1 + $0x9c] sm:$0xf]
    %v56 = vld [vmem:[%s1 + $0xa0] sm:$0xf]
    %v57 = vld [vmem:[%s1 + $0xa4] sm:$0xf]
    %v58 = vld [vmem:[%s1 + $0xa8] sm:$0xf]
    %v59 = vld [vmem:[%s1 + $0xac] sm:$0xf]
    %v60 = vld [vmem:[%s1 + $0xb0] sm:$0xf]
    %v61 = vld [vmem:[%s1 + $0xb4] sm:$0xf]
    %v62 = vld [vmem:[%s1 + $0xb8] sm:$0xf]
    %v63 = vld [vmem:[%s1 + $0xbc] sm:$0xf]
    %v64 = vld [vmem:[%s1 + $0xc0] sm:$0xf]
    %v65 = vld [vmem:[%s1 + $0xc4] sm:$0xf]
    %v66 = vld [vmem:[%s1 + $0xc8] sm:$0xf]
    %v67 = vld [vmem:[%s1 + $0xcc] sm:$0xf]
    %v68 = vld [vmem:[%s1 + $0xd0] sm:$0xf]
    %v69 = vld [vmem:[%s1 + $0xd4] sm:$0xf]
    %v70 = vld [vmem:[%s1 + $0xd8] sm:$0xf]
    %v71 = vld [vmem:[%s1 + $0xdc] sm:$0xf]
    %v72 = vld [vmem:[%s1 + $0xe0] sm:$0xf]
    %v73 = vld [vmem:[%s1 + $0xe4] sm:$0xf]
    %v74 = vld [vmem:[%s1 + $0xe8] sm:$0xf]
    %v75 = vld [vmem:[%s1 + $0xec] sm:$0xf]
    %v76 = vld [vmem:[%s1 + $0xf0] sm:$0xf]
    %v77 = vld [vmem:[%s1 + $0xf4] sm:$0xf]
    %v78 = vld [vmem:[%s1 + $0xf8] sm:$0xf]
    %v79 = vld [vmem:[%s1 + $0xfc] sm:$0xf]
    %v80 = vld [vmem:[%s1 + $0x100] sm:$0xf]
    %v81 = vld [vmem:[%s1 + $0x104] sm:$0xf]
    %v82 = vld [vmem:[%s1 + $0x108] sm:$0xf]
    %v83 = vld [vmem:[%s1 + $0x10c] sm:$0xf]
    %v84 = vld [vmem:[%s1 + $0x110] sm:$0xf]
    %v85 = vld [vmem:[%s1 + $0x114] sm:$0xf]
    %v86 = vld [vmem:[%s1 + $0x118] sm:$0xf]
    %v87 = vld [vmem:[%s1 + $0x11c] sm:$0xf]
    %v88 = vld [vmem:[%s1 + $0x120] sm:$0xf]
    %v89 = vld [vmem:[%s1 + $0x124] sm:$0xf]
    %v90 = vld [vmem:[%s1 + $0x128] sm:$0xf]
    %v91 = vld [vmem:[%s1 + $0x12c] sm:$0xf]
    %v92 = vld [vmem:[%s1 + $0x130] sm:$0xf]
    %v93 = vld [vmem:[%s1 + $0x134] sm:$0xf]
    %v94 = vld [vmem:[%s1 + $0x138] sm:$0xf]
    %v95 = vld [vmem:[%s1 + $0x13c] sm:$0xf]
    %v96 = vld [vmem:[%s1 + $0x140] sm:$0xf]
    %v97 = vld [vmem:[%s1 + $0x144] sm:$0xf]
    %v98 = vld [vmem:[%s1 + $0x148] sm:$0xf]
    %v99 = vld [vmem:[%s1 + $0x14c] sm:$0xf]
    %v100 = vld [vmem:[%s1 + $0x150] sm:$0xf]
    %v101 = vld [vmem:[%s1 + $0x154] sm:$0xf]
    %v102 = vld [vmem:[%s1 + $0x158] sm:$0xf]
    %v103 = vld [vmem:[%s1 + $0x15c] sm:$0xf]
    %v104 = vld [vmem:[%s1 + $0x160] sm:$0xf]
    %v105 = vld [vmem:[%s1 + $0x164] sm:$0xf]
    %v106 = vld [vmem:[%s1 + $0x168] sm:$0xf]
    %v107 = vld [vmem:[%s1 + $0x16c] sm:$0xf]
    %v108 = vld [vmem:[%s1 + $0x170] sm:$0xf]
    %v109 = vld [vmem:[%s1 + $0x174] sm:$0xf]
    %v110 = vld [vmem:[%s1 + $0x178] sm:$0xf]
    %v111 = vld [vmem:[%s1 + $0x17c] sm:$0xf]
    %113 = vst [vmem:[#allocation1] ss:$9 sm:$0xff] %v15
    %v114 = vld [vmem:[#allocation1] sm:$0xff]
    %v115 = vld [vmem:[#allocation1 + $0x9] sm:$0xff]
    %v116 = vld [vmem:[#allocation1 + $0x12] sm:$0xff]
    %v117 = vld [vmem:[#allocation1 + $0x1b] sm:$0xff]
    %v118 = vld [vmem:[#allocation1 + $0x24] sm:$0xff]
    %v119 = vld [vmem:[#allocation1 + $0x2d] sm:$0xff]
    %v222 = vunpack.c.l.b16 %v16
    %v223 = vunpack.c.l.b16 %v17
    %v224 = vunpack.c.l.b16 %v18
    %v225 = vunpack.c.l.b16 %v19
    %v226 = vunpack.c.l.b16 %v20
    %v227 = vunpack.c.l.b16 %v21
    %v228 = vunpack.c.l.b16 %v22
    %v229 = vunpack.c.l.b16 %v23
    %v230 = vunpack.c.l.b16 %v24
    %v231 = vunpack.c.l.b16 %v25
    %v232 = vunpack.c.l.b16 %v26
    %v233 = vunpack.c.l.b16 %v27
    %v234 = vunpack.c.l.b16 %v28
    %v235 = vunpack.c.l.b16 %v29
    %v236 = vunpack.c.l.b16 %v30
    %v237 = vunpack.c.l.b16 %v31
    %v238 = vunpack.c.l.b16 %v32
    %v239 = vunpack.c.l.b16 %v33
    %v240 = vunpack.c.l.b16 %v34
    %v241 = vunpack.c.l.b16 %v35
    %v242 = vunpack.c.l.b16 %v36
    %v243 = vunpack.c.l.b16 %v37
    %v244 = vunpack.c.l.b16 %v38
    %v245 = vunpack.c.l.b16 %v39
    %v246 = vunpack.c.l.b16 %v40
    %v247 = vunpack.c.l.b16 %v41
    %v248 = vunpack.c.l.b16 %v42
    %v249 = vunpack.c.l.b16 %v43
    %v250 = vunpack.c.l.b16 %v44
    %v251 = vunpack.c.l.b16 %v45
    %v252 = vunpack.c.l.b16 %v46
    %v253 = vunpack.c.l.b16 %v47
    %v254 = vunpack.c.l.b16 %v48
    %v255 = vunpack.c.l.b16 %v49
    %v256 = vunpack.c.l.b16 %v50
    %v257 = vunpack.c.l.b16 %v51
    %v258 = vunpack.c.l.b16 %v52
    %v259 = vunpack.c.l.b16 %v53
    %v260 = vunpack.c.l.b16 %v54
    %v261 = vunpack.c.l.b16 %v55
    %v262 = vunpack.c.l.b16 %v56
    %v263 = vunpack.c.l.b16 %v57
    %v264 = vunpack.c.l.b16 %v58
    %v265 = vunpack.c.l.b16 %v59
    %v266 = vunpack.c.l.b16 %v60
    %v267 = vunpack.c.l.b16 %v61
    %v268 = vunpack.c.l.b16 %v62
    %v269 = vunpack.c.l.b16 %v63
    %v270 = vunpack.c.l.b16 %v64
    %v271 = vunpack.c.l.b16 %v65
    %v272 = vunpack.c.l.b16 %v66
    %v273 = vunpack.c.l.b16 %v67
    %v274 = vunpack.c.l.b16 %v68
    %v275 = vunpack.c.l.b16 %v69
    %v276 = vunpack.c.l.b16 %v70
    %v277 = vunpack.c.l.b16 %v71
    %v278 = vunpack.c.l.b16 %v72
    %v279 = vunpack.c.l.b16 %v73
    %v280 = vunpack.c.l.b16 %v74
    %v281 = vunpack.c.l.b16 %v75
    %v282 = vunpack.c.l.b16 %v76
    %v283 = vunpack.c.l.b16 %v77
    %v284 = vunpack.c.l.b16 %v78
    %v285 = vunpack.c.l.b16 %v79
    %v286 = vunpack.c.l.b16 %v80
    %v287 = vunpack.c.l.b16 %v81
    %v288 = vunpack.c.l.b16 %v82
    %v289 = vunpack.c.l.b16 %v83
    %v290 = vunpack.c.l.b16 %v84
    %v291 = vunpack.c.l.b16 %v85
    %v292 = vunpack.c.l.b16 %v86
    %v293 = vunpack.c.l.b16 %v87
    %v294 = vunpack.c.l.b16 %v88
    %v295 = vunpack.c.l.b16 %v89
    %v296 = vunpack.c.l.b16 %v90
    %v297 = vunpack.c.l.b16 %v91
    %v298 = vunpack.c.l.b16 %v92
    %v299 = vunpack.c.l.b16 %v93
    %v300 = vunpack.c.l.b16 %v94
    %v301 = vunpack.c.l.b16 %v95
    %v302 = vunpack.c.l.b16 %v96
    %v303 = vunpack.c.l.b16 %v97
    %v304 = vunpack.c.l.b16 %v98
    %v305 = vunpack.c.l.b16 %v99
    %v306 = vunpack.c.l.b16 %v100
    %v307 = vunpack.c.l.b16 %v101
    %v308 = vunpack.c.l.b16 %v102
    %v309 = vunpack.c.l.b16 %v103
    %v310 = vunpack.c.l.b16 %v104
    %v311 = vunpack.c.l.b16 %v105
    %v312 = vunpack.c.l.b16 %v106
    %v313 = vunpack.c.l.b16 %v107
    %v314 = vunpack.c.l.b16 %v108
    %v315 = vunpack.c.l.b16 %v109
    %v316 = vunpack.c.l.b16 %v110
    %v317 = vunpack.c.l.b16 %v111
    %v318 = vpack.c.b16 %v223, %v222
    %v319 = vpack.c.b16 %v225, %v224
    %v320 = vpack.c.b16 %v227, %v226
    %v321 = vpack.c.b16 %v229, %v228
    %v322 = vpack.c.b16 %v231, %v230
    %v323 = vpack.c.b16 %v233, %v232
    %v324 = vpack.c.b16 %v235, %v234
    %v325 = vpack.c.b16 %v237, %v236
    %v326 = vpack.c.b16 %v239, %v238
    %v327 = vpack.c.b16 %v241, %v240
    %v328 = vpack.c.b16 %v243, %v242
    %v329 = vpack.c.b16 %v245, %v244
    %v330 = vpack.c.b16 %v247, %v246
    %v331 = vpack.c.b16 %v249, %v248
    %v332 = vpack.c.b16 %v251, %v250
    %v333 = vpack.c.b16 %v253, %v252
    %v334 = vpack.c.b16 %v255, %v254
    %v335 = vpack.c.b16 %v257, %v256
    %v336 = vpack.c.b16 %v259, %v258
    %v337 = vpack.c.b16 %v261, %v260
    %v338 = vpack.c.b16 %v263, %v262
    %v339 = vpack.c.b16 %v265, %v264
    %v340 = vpack.c.b16 %v267, %v266
    %v341 = vpack.c.b16 %v269, %v268
    %v342 = vpack.c.b16 %v271, %v270
    %v343 = vpack.c.b16 %v273, %v272
    %v344 = vpack.c.b16 %v275, %v274
    %v345 = vpack.c.b16 %v277, %v276
    %v346 = vpack.c.b16 %v279, %v278
    %v347 = vpack.c.b16 %v281, %v280
    %v348 = vpack.c.b16 %v283, %v282
    %v349 = vpack.c.b16 %v285, %v284
    %v350 = vpack.c.b16 %v287, %v286
    %v351 = vpack.c.b16 %v289, %v288
    %v352 = vpack.c.b16 %v291, %v290
    %v353 = vpack.c.b16 %v293, %v292
    %v354 = vpack.c.b16 %v295, %v294
    %v355 = vpack.c.b16 %v297, %v296
    %v356 = vpack.c.b16 %v299, %v298
    %v357 = vpack.c.b16 %v301, %v300
    %v358 = vpack.c.b16 %v303, %v302
    %v359 = vpack.c.b16 %v305, %v304
    %v360 = vpack.c.b16 %v307, %v306
    %v361 = vpack.c.b16 %v309, %v308
    %v362 = vpack.c.b16 %v311, %v310
    %v363 = vpack.c.b16 %v313, %v312
    %v364 = vpack.c.b16 %v315, %v314
    %v365 = vpack.c.b16 %v317, %v316
    %414 = vmatpush.bf16.msra.mxu0 %v325
    %415 = vmatpush.bf16.msra.mxu0 %v324
    %416 = vmatpush.bf16.msra.mxu0 %v323
    %417 = vmatpush.bf16.msra.mxu0 %v322
    %418 = vmatpush.bf16.msra.mxu0 %v321
    %419 = vmatpush.bf16.msra.mxu0 %v320
    %420 = vmatpush.bf16.msra.mxu0 %v319
    %421 = vmatpush.bf16.msra.mxu0 %v318
    %422 = vmatmul.bf16.gmra.mxu0 %v114
    %v423 = vpop.f32.mrf.mxu0
    %v424 = vadd.f32 0.0, %v423
    %v425 = vpop.f32.mrf.mxu0
    %426 = vdwg.mxu0
    %427 = vmatpush.bf16.msra.mxu0 %v333
    %428 = vmatpush.bf16.msra.mxu0 %v332
    %429 = vmatpush.bf16.msra.mxu0 %v331
    %430 = vmatpush.bf16.msra.mxu0 %v330
    %431 = vmatpush.bf16.msra.mxu0 %v329
    %432 = vmatpush.bf16.msra.mxu0 %v328
    %433 = vmatpush.bf16.msra.mxu0 %v327
    %434 = vmatpush.bf16.msra.mxu0 %v326
    %435 = vmatmul.bf16.gmra.mxu0 %v115
    %v436 = vpop.f32.mrf.mxu0
    %v437 = vadd.f32 %v424, %v436
    %v438 = vpop.f32.mrf.mxu0
    %439 = vdwg.mxu0
    %440 = vmatpush.bf16.msra.mxu0 %v341
    %441 = vmatpush.bf16.msra.mxu0 %v340
    %442 = vmatpush.bf16.msra.mxu0 %v339
    %443 = vmatpush.bf16.msra.mxu0 %v338
    %444 = vmatpush.bf16.msra.mxu0 %v337
    %445 = vmatpush.bf16.msra.mxu0 %v336
    %446 = vmatpush.bf16.msra.mxu0 %v335
    %447 = vmatpush.bf16.msra.mxu0 %v334
    %448 = vmatmul.bf16.gmra.mxu0 %v116
    %v449 = vpop.f32.mrf.mxu0
    %v450 = vadd.f32 %v437, %v449
    %v451 = vpop.f32.mrf.mxu0
    %452 = vdwg.mxu0
    %453 = vmatpush.bf16.msra.mxu0 %v349
    %454 = vmatpush.bf16.msra.mxu0 %v348
    %455 = vmatpush.bf16.msra.mxu0 %v347
    %456 = vmatpush.bf16.msra.mxu0 %v346
    %457 = vmatpush.bf16.msra.mxu0 %v345
    %458 = vmatpush.bf16.msra.mxu0 %v344
    %459 = vmatpush.bf16.msra.mxu0 %v343
    %460 = vmatpush.bf16.msra.mxu0 %v342
    %461 = vmatmul.bf16.gmra.mxu0 %v117
    %v462 = vpop.f32.mrf.mxu0
    %v463 = vadd.f32 %v450, %v462
    %v464 = vpop.f32.mrf.mxu0
    %465 = vdwg.mxu0
    %466 = vmatpush.bf16.msra.mxu0 %v357
    %467 = vmatpush.bf16.msra.mxu0 %v356
    %468 = vmatpush.bf16.msra.mxu0 %v355
    %469 = vmatpush.bf16.msra.mxu0 %v354
    %470 = vmatpush.bf16.msra.mxu0 %v353
    %471 = vmatpush.bf16.msra.mxu0 %v352
    %472 = vmatpush.bf16.msra.mxu0 %v351
    %473 = vmatpush.bf16.msra.mxu0 %v350
    %474 = vmatmul.bf16.gmra.mxu0 %v118
    %v475 = vpop.f32.mrf.mxu0
    %v476 = vadd.f32 %v463, %v475
    %v477 = vpop.f32.mrf.mxu0
    %478 = vdwg.mxu0
    %479 = vmatpush.bf16.msra.mxu0 %v365
    %480 = vmatpush.bf16.msra.mxu0 %v364
    %481 = vmatpush.bf16.msra.mxu0 %v363
    %482 = vmatpush.bf16.msra.mxu0 %v362
    %483 = vmatpush.bf16.msra.mxu0 %v361
    %484 = vmatpush.bf16.msra.mxu0 %v360
    %485 = vmatpush.bf16.msra.mxu0 %v359
    %486 = vmatpush.bf16.msra.mxu0 %v358
    %487 = vmatmul.bf16.gmra.mxu0 %v119
    %v488 = vpop.f32.mrf.mxu0
    %v489 = vadd.f32 %v476, %v488
    %v490 = vpop.f32.mrf.mxu0
    %491 = vdwg.mxu0
    %v492 = vld [vmem:[%s2] sm:$0x3]
    %v493 = vmul.f32 %v489, %v489
    %vm494 = vcmask 254976
    %v495 = vsel %vm494, %v493, 0.0
    %496 = vadd.xlane.f32.xlu0 %v495
    %v497 = vpop.xlane.xlu0 %496
    %v498 = vadd.f32 %v497, 1e-12
    %v499 = vrsqrt.pop %v498
    %v500 = vmul.f32 %v499, %v498
    %v501 = vmul.f32 %v500, %v499
    %v502 = vmul.f32 0.5, %v501
    %v503 = vsub.f32 1.5, %v502
    %v504 = vmul.f32 %v499, %v503
    %vm505 = vweird.f32 %v498
    %vm506 = vweird.f32 %v499
    %vm507 = vmor %vm505, %vm506
    %v508 = vsel %vm507, %v499, %v504
    %v509 = vmul.f32 %v489, %v508
    %v510 = vmul.f32 %v492, %v492
    %v511 = vsel %vm494, %v510, 0.0
    %512 = vadd.xlane.f32.xlu0 %v511
    %v513 = vpop.xlane.xlu0 %512
    %v514 = vadd.f32 %v513, 1e-12
    %v515 = vrsqrt.pop %v514
    %v516 = vmul.f32 %v515, %v514
    %v517 = vmul.f32 %v516, %v515
    %v518 = vmul.f32 0.5, %v517
    %v519 = vsub.f32 1.5, %v518
    %v520 = vmul.f32 %v515, %v519
    %vm521 = vweird.f32 %v514
    %vm522 = vweird.f32 %v515
    %vm523 = vmor %vm521, %vm522
    %v524 = vsel %vm523, %v515, %v520
    %v525 = vmul.f32 %v492, %v524
    %vm526 = vcmask 261120
    %v528 = vsel %vm526, %v509, 0
    %v531 = vsel %vm526, %v525, 0
    %533 = vmatpush.xpose.msra.mxu0 0.0
    %534 = vmatpush.xpose.msra.mxu0 0.0
    %535 = vmatpush.xpose.msra.mxu0 0.0
    %536 = vmatpush.xpose.msra.mxu0 0.0
    %537 = vmatpush.xpose.msra.mxu0 0.0
    %538 = vmatpush.xpose.msra.mxu0 0.0
    %539 = vmatpush.xpose.msra.mxu0 0.0
    %540 = vmatpush.xpose.msra.mxu0 0.0
    %541 = vmatpush.xpose.msra.mxu0 0.0
    %542 = vmatpush.xpose.msra.mxu0 0.0
    %543 = vmatpush.xpose.msra.mxu0 0.0
    %544 = vmatpush.xpose.msra.mxu0 0.0
    %545 = vmatpush.xpose.msra.mxu0 0.0
    %546 = vmatpush.xpose.msra.mxu0 0.0
    %547 = vmatpush.xpose.msra.mxu0 0.0
    %548 = vmatpush.xpose.msra.mxu0 %v531
    %549 = vmatmul.f32.gmra.mxu0 %v528
    %v550 = vpop.f32.mrf.mxu0
    %v551 = vadd.f32 0.0, %v550
    %552 = vdwg.mxu0
    %v553 = vmul.f32 %v551, 14.285714
    %v554 = vrcp.pop 100.0
    %v555 = vmul.f32 100.0, %v554
    %v556 = vsub.f32 1.0, %v555
    %v557 = vmul.f32 %v554, %v556
    %v558 = vadd.f32 %v554, %v557
    %vm559 = vweird.f32 %v554
    %v560 = vsel %vm559, %v554, %v558
    %v561 = vmul.f32 %v553, %v560
    %v562 = vsub.f32 1.0, %v561
    %vm563 = vcmask 9216
    %564 = vst.msk [vmem:[#allocation2] sm:$0x3] %vm563, %v562
    // Predicated region
    $region14: #{clip_loss_forward.1} parent=1 // pred_check
      _
    $region15: #{clip_loss_forward.1} parent=1 // pred_check_branch
      %566 = sbr.rel (0) target = $region17
    $region16: #{clip_loss_forward.1} parent=1 // pred_region
      %568 = vsyncadd [#allocation3], 0
      %s570 = sshll.u32 [#allocation2], 4
      %s571 = int_to_ptr.vmem [resolvable:$true] %s570
      %s572 = sshll.u32 %s3, 4
      %s573 = int_to_ptr.hbm [resolvable:$true] %s572
      %575 = dma.vmem_to_hbm [thread:$0]  %s571, 32, %s573, [#allocation3]
    $region17: #{clip_loss_forward.1} parent=1 // pred_fallthru
      _
    // Predicated region
    $region18: #{clip_loss_forward.1} parent=1 // pred_check
      _
    $region19: #{clip_loss_forward.1} parent=1 // pred_check_branch
      %577 = sbr.rel (0) target = $region21
    $region20: #{clip_loss_forward.1} parent=1 // pred_region
      %579 = dma.done [#allocation3], 32
    $region21: #{clip_loss_forward.1} parent=1 // pred_fallthru
      _
    %580 = vsyncpa [#allocation3], 1

</llo_original>
